<compile_context>
chip_gen: v7x
topology: tpu7x:2x2x1
jax: 0.10.0
libtpu: 0.0.40
codegen_flags: <defaults>
</compile_context>

<pallas_src>
import jax
import jax.numpy as jnp
from jax.experimental import pallas as pl
from jax.experimental.pallas import tpu as pltpu


def _round_up(x, m):
    return (x + m - 1) // m * m


def feedforward_kernel(x_ref, sc_ref, sh_ref, w_in_ref, w_out_ref, o_ref, acc_ref):
    """Grid: (row_tiles, hidden_tiles).  hidden_tiles is the reduction axis."""
    j = pl.program_id(1)

    # ---- LayerNorm (scale=False), f32 stats, var clamped at eps (matches the
    #      module's `var.clamp(min=eps).rsqrt()`) ----
    x = x_ref[...].astype(jnp.float32)                       # (TILE_M, dim)
    mean = jnp.mean(x, axis=-1, keepdims=True)
    diff = x - mean
    var = jnp.mean(diff * diff, axis=-1, keepdims=True)
    xn = diff * jax.lax.rsqrt(jnp.maximum(var, 1e-5))

    # ---- proj_in slab: (TILE_M, dim) @ (dim, TILE_H), bf16 in / f32 out ----
    h = jnp.dot(xn.astype(jnp.bfloat16), w_in_ref[...],
                preferred_element_type=jnp.float32)          # (TILE_M, TILE_H)
    h = h * jax.nn.sigmoid(h)                                # SiLU in f32

    # ---- modulation with precomputed per-row scale/shift (f32) ----
    h = h * (sc_ref[...] + 1.0) + sh_ref[...]

    # ---- proj_out: accumulate partial (TILE_M, dim) over hidden tiles ----
    @pl.when(j == 0)
    def _init():
        acc_ref[...] = jnp.zeros_like(acc_ref)

    acc_ref[...] += jnp.dot(h.astype(jnp.bfloat16), w_out_ref[...],
                            preferred_element_type=jnp.float32)

    @pl.when(j == pl.num_programs(1) - 1)
    def _finalize():
        o_ref[...] = acc_ref[...].astype(o_ref.dtype)


def feedforward(x, t, w_in, w_ss, b_ss, w_out, *, tile_m=256, tile_h=512):
    """x: (b, n, dim) f32, t: (b, cond_dim) f32. Returns (b, n, dim) f32."""
    b, n, dim = x.shape
    hidden = w_in.shape[-1]

    # --- conditioning path in plain XLA (single row per batch, not worth an
    #     MXU weight push inside the kernel) ---
    tc = t * jax.nn.sigmoid(t)                               # SiLU(t)
    ss = tc @ w_ss + b_ss                                    # (b, 2*hidden)
    scale = ss[:, :hidden]
    shift = ss[:, hidden:]

    # --- fold batch*seq into the matmul M dimension ---
    M = b * n
    x2 = x.reshape(M, dim).astype(jnp.float32)
    scale_rows = jnp.broadcast_to(scale[:, None, :], (b, n, hidden)).reshape(M, hidden)
    shift_rows = jnp.broadcast_to(shift[:, None, :], (b, n, hidden)).reshape(M, hidden)
    scale_rows = scale_rows.astype(jnp.float32)
    shift_rows = shift_rows.astype(jnp.float32)

    # --- tile sizes / padding (8-aligned rows, 128-aligned hidden) ---
    TILE_M = min(tile_m, _round_up(M, 8))
    TILE_H = min(tile_h, _round_up(hidden, 128))
    M_pad = _round_up(M, TILE_M)
    H_pad = _round_up(hidden, TILE_H)

    if M_pad != M:
        pad_m = M_pad - M
        x2 = jnp.pad(x2, ((0, pad_m), (0, 0)))
        scale_rows = jnp.pad(scale_rows, ((0, pad_m), (0, 0)))
        shift_rows = jnp.pad(shift_rows, ((0, pad_m), (0, 0)))

    if H_pad != hidden:
        pad_h = H_pad - hidden
        w_in_p = jnp.pad(w_in, ((0, 0), (0, pad_h)))
        w_out_p = jnp.pad(w_out, ((0, pad_h), (0, 0)))
        scale_rows = jnp.pad(scale_rows, ((0, 0), (0, pad_h)))
        shift_rows = jnp.pad(shift_rows, ((0, 0), (0, pad_h)))
    else:
        w_in_p, w_out_p = w_in, w_out

    # bf16 weights: halves weight DMA and uses native MXU bf16 throughput.
    w_in_bf = w_in_p.astype(jnp.bfloat16)
    w_out_bf = w_out_p.astype(jnp.bfloat16)

    grid = (M_pad // TILE_M, H_pad // TILE_H)

    out2 = pl.pallas_call(
        feedforward_kernel,
        out_shape=jax.ShapeDtypeStruct((M_pad, dim), jnp.float32),
        grid_spec=pltpu.PrefetchScalarGridSpec(
            num_scalar_prefetch=0,
            grid=grid,
            in_specs=[
                pl.BlockSpec((TILE_M, dim), lambda i, j: (i, 0)),      # x rows
                pl.BlockSpec((TILE_M, TILE_H), lambda i, j: (i, j)),   # scale rows
                pl.BlockSpec((TILE_M, TILE_H), lambda i, j: (i, j)),   # shift rows
                pl.BlockSpec((dim, TILE_H), lambda i, j: (0, j)),      # W_in slab
                pl.BlockSpec((TILE_H, dim), lambda i, j: (j, 0)),      # W_out slab
            ],
            out_specs=pl.BlockSpec((TILE_M, dim), lambda i, j: (i, 0)),
            scratch_shapes=[pltpu.VMEM((TILE_M, dim), jnp.float32)],   # proj_out acc
        ),
        compiler_params=pltpu.CompilerParams(
            dimension_semantics=("parallel", "arbitrary"),
        ),
    )(x2, scale_rows, shift_rows, w_in_bf, w_out_bf)

    return out2[:M].reshape(b, n, dim)
    # TODO(synk): at dim=32 the output store is lane-masked (32/128 lanes); real
    # model configs with dim a multiple of 128 get unmasked lane-dense stores.


def feedforward_reference(x, t, w_in, w_ss, b_ss, w_out):
    mean = jnp.mean(x, axis=-1, keepdims=True)
    var = jnp.mean((x - mean) ** 2, axis=-1, keepdims=True)
    xn = (x - mean) * jax.lax.rsqrt(jnp.maximum(var, 1e-5))
    h = xn @ w_in
    h = h * jax.nn.sigmoid(h)
    tc = t * jax.nn.sigmoid(t)
    ss = tc @ w_ss + b_ss
    hidden = w_in.shape[-1]
    scale = ss[:, :hidden][:, None, :]
    shift = ss[:, hidden:][:, None, :]
    h = h * (scale + 1.0) + shift
    return h @ w_out


if __name__ == "__main__":
    # Small shapes consistent with the module: dim=32, cond_dim=16, mult=4.
    batch, seq, dim, cond_dim, mult = 2, 8, 32, 16, 4
    hidden = dim * mult

    key = jax.random.PRNGKey(0)
    kx, kt, k1, k2, k3, k4 = jax.random.split(key, 6)

    x = jax.random.normal(kx, (batch, seq, dim), dtype=jnp.float32)
    t = jax.random.normal(kt, (batch, cond_dim), dtype=jnp.float32)

    # Deterministic parameter init (the module zero-inits the scale/shift
    # linear; use small random values so the modulation path is exercised).
    w_in = jax.random.normal(k1, (dim, hidden), dtype=jnp.float32) * 0.05
    w_ss = jax.random.normal(k2, (cond_dim, 2 * hidden), dtype=jnp.float32) * 0.05
    b_ss = jax.random.normal(k3, (2 * hidden,), dtype=jnp.float32) * 0.05
    w_out = jax.random.normal(k4, (hidden, dim), dtype=jnp.float32) * 0.05

    out = feedforward(x, t, w_in, w_ss, b_ss, w_out)
    out = jax.block_until_ready(out)

    ref = feedforward_reference(x, t, w_in, w_ss, b_ss, w_out)
    assert out.shape == (batch, seq, dim)
    # bf16 matmul inputs (f32 accumulation) -> relaxed tolerance vs f32 reference.
    assert jnp.allclose(out, ref, atol=2e-2, rtol=2e-2), "mismatch vs reference"

    print("KERNEL_OK")
</pallas_src>

<mosaic_0001>
module attributes {stable_mosaic.version = 11 : i64} {
  func.func @feedforward_kernel(%arg0: i32, %arg1: i32, %arg2: memref<16x32xf32, #tpu.memory_space<vmem>>, %arg3: memref<16x128xf32, #tpu.memory_space<vmem>>, %arg4: memref<16x128xf32, #tpu.memory_space<vmem>>, %arg5: memref<32x128xbf16, #tpu.memory_space<vmem>>, %arg6: memref<128x32xbf16, #tpu.memory_space<vmem>>, %arg7: memref<16x32xf32, #tpu.memory_space<vmem>>, %arg8: memref<16x32xf32, #tpu.memory_space<vmem>>) attributes {dimension_semantics = [#tpu.dimension_semantics<parallel>, #tpu.dimension_semantics<arbitrary>], iteration_bounds = array<i64: 1, 1>, scalar_prefetch = 0 : i64, scratch_operands = 1 : i64, tpu.core_type = #tpu.core_type<tc>, window_params = [{transform_indices = @transform_0, window_bounds = array<i64: 16, 32>}, {transform_indices = @transform_1, window_bounds = array<i64: 16, 128>}, {transform_indices = @transform_2, window_bounds = array<i64: 16, 128>}, {transform_indices = @transform_3, window_bounds = array<i64: 32, 128>}, {transform_indices = @transform_4, window_bounds = array<i64: 128, 32>}, {transform_indices = @transform_5, window_bounds = array<i64: 16, 32>}]} {
    %c0 = arith.constant 0 : index
    %c0_0 = arith.constant 0 : index
    %0 = vector.load %arg2[%c0, %c0_0] : memref<16x32xf32, #tpu.memory_space<vmem>>, vector<16x32xf32>
    %cst = arith.constant dense<0.000000e+00> : vector<16xf32>
    %1 = vector.multi_reduction <add>, %0, %cst [1] : vector<16x32xf32> to vector<16xf32>
    %2 = vector.shape_cast %1 : vector<16xf32> to vector<16x1xf32>
    %cst_1 = arith.constant 3.200000e+01 : f32
    %3 = vector.broadcast %cst_1 : f32 to vector<16x1xf32>
    %4 = arith.divf %2, %3 : vector<16x1xf32>
    %5 = vector.broadcast %4 : vector<16x1xf32> to vector<16x32xf32>
    %6 = arith.subf %0, %5 : vector<16x32xf32>
    %7 = arith.mulf %6, %6 : vector<16x32xf32>
    %cst_2 = arith.constant dense<0.000000e+00> : vector<16xf32>
    %8 = vector.multi_reduction <add>, %7, %cst_2 [1] : vector<16x32xf32> to vector<16xf32>
    %9 = vector.shape_cast %8 : vector<16xf32> to vector<16x1xf32>
    %cst_3 = arith.constant 3.200000e+01 : f32
    %10 = vector.broadcast %cst_3 : f32 to vector<16x1xf32>
    %11 = arith.divf %9, %10 : vector<16x1xf32>
    %cst_4 = arith.constant 9.99999974E-6 : f32
    %12 = vector.broadcast %cst_4 : f32 to vector<16x1xf32>
    %13 = arith.maximumf %11, %12 : vector<16x1xf32>
    %14 = math.rsqrt %13 : vector<16x1xf32>
    %15 = vector.broadcast %14 : vector<16x1xf32> to vector<16x32xf32>
    %16 = arith.mulf %6, %15 : vector<16x32xf32>
    %17 = arith.truncf %16 : vector<16x32xf32> to vector<16x32xbf16>
    %c0_5 = arith.constant 0 : index
    %c0_6 = arith.constant 0 : index
    %18 = vector.load %arg5[%c0_5, %c0_6] : memref<32x128xbf16, #tpu.memory_space<vmem>>, vector<32x128xbf16>
    %cst_7 = arith.constant dense<0.000000e+00> : vector<16x128xf32>
    %19 = tpu.matmul %17, %18, %cst_7 {dimension_numbers = #tpu.dot_dimension_numbers<[1], [0], [0], [1], [0, 0, 1, 1], [], []>} : vector<16x32xbf16>, vector<32x128xbf16>, vector<16x128xf32> -> vector<16x128xf32>
    %20 = arith.negf %19 : vector<16x128xf32>
    %21 = math.exp %20 : vector<16x128xf32>
    %cst_8 = arith.constant 1.000000e+00 : f32
    %22 = vector.broadcast %cst_8 : f32 to vector<16x128xf32>
    %23 = arith.addf %22, %21 : vector<16x128xf32>
    %24 = arith.divf %22, %23 : vector<16x128xf32>
    %25 = arith.mulf %19, %24 : vector<16x128xf32>
    %c0_9 = arith.constant 0 : index
    %c0_10 = arith.constant 0 : index
    %26 = vector.load %arg3[%c0_9, %c0_10] : memref<16x128xf32, #tpu.memory_space<vmem>>, vector<16x128xf32>
    %cst_11 = arith.constant 1.000000e+00 : f32
    %27 = vector.broadcast %cst_11 : f32 to vector<16x128xf32>
    %28 = arith.addf %26, %27 : vector<16x128xf32>
    %29 = arith.mulf %25, %28 : vector<16x128xf32>
    %c0_12 = arith.constant 0 : index
    %c0_13 = arith.constant 0 : index
    %30 = vector.load %arg4[%c0_12, %c0_13] : memref<16x128xf32, #tpu.memory_space<vmem>>, vector<16x128xf32>
    %31 = arith.addf %29, %30 : vector<16x128xf32>
    %c0_i32 = arith.constant 0 : i32
    %32 = arith.cmpi eq, %arg1, %c0_i32 : i32
    %33 = arith.extui %32 : i1 to i32
    %c0_i32_14 = arith.constant 0 : i32
    %34 = arith.cmpi ne, %33, %c0_i32_14 : i32
    scf.if %34 {
      %cst_24 = arith.constant 0.000000e+00 : f32
      %44 = vector.broadcast %cst_24 : f32 to vector<16x32xf32>
      %c0_25 = arith.constant 0 : index
      %c0_26 = arith.constant 0 : index
      %45 = vector.load %arg8[%c0_25, %c0_26] : memref<16x32xf32, #tpu.memory_space<vmem>>, vector<16x32xf32>
      tpu.vector_store %arg8[%c0_25, %c0_26], %44 {strides = array<i32>} : memref<16x32xf32, #tpu.memory_space<vmem>>, vector<16x32xf32>,
    } else {
    }
    %c0_15 = arith.constant 0 : index
    %c0_16 = arith.constant 0 : index
    %35 = vector.load %arg8[%c0_15, %c0_16] : memref<16x32xf32, #tpu.memory_space<vmem>>, vector<16x32xf32>
    %36 = arith.truncf %31 : vector<16x128xf32> to vector<16x128xbf16>
    %c0_17 = arith.constant 0 : index
    %c0_18 = arith.constant 0 : index
    %37 = vector.load %arg6[%c0_17, %c0_18] : memref<128x32xbf16, #tpu.memory_space<vmem>>, vector<128x32xbf16>
    %cst_19 = arith.constant dense<0.000000e+00> : vector<16x32xf32>
    %38 = tpu.matmul %36, %37, %cst_19 {dimension_numbers = #tpu.dot_dimension_numbers<[1], [0], [0], [1], [0, 0, 1, 1], [], []>} : vector<16x128xbf16>, vector<128x32xbf16>, vector<16x32xf32> -> vector<16x32xf32>
    %39 = arith.addf %35, %38 : vector<16x32xf32>
    %c0_20 = arith.constant 0 : index
    %c0_21 = arith.constant 0 : index
    %40 = vector.load %arg8[%c0_20, %c0_21] : memref<16x32xf32, #tpu.memory_space<vmem>>, vector<16x32xf32>
    tpu.vector_store %arg8[%c0_20, %c0_21], %39 {strides = array<i32>} : memref<16x32xf32, #tpu.memory_space<vmem>>, vector<16x32xf32>,
    %c0_i32_22 = arith.constant 0 : i32
    %41 = arith.cmpi eq, %arg1, %c0_i32_22 : i32
    %42 = arith.extui %41 : i1 to i32
    %c0_i32_23 = arith.constant 0 : i32
    %43 = arith.cmpi ne, %42, %c0_i32_23 : i32
    scf.if %43 {
      %c0_24 = arith.constant 0 : index
      %c0_25 = arith.constant 0 : index
      %44 = vector.load %arg8[%c0_24, %c0_25] : memref<16x32xf32, #tpu.memory_space<vmem>>, vector<16x32xf32>
      %c0_26 = arith.constant 0 : index
      %c0_27 = arith.constant 0 : index
      %45 = vector.load %arg7[%c0_26, %c0_27] : memref<16x32xf32, #tpu.memory_space<vmem>>, vector<16x32xf32>
      tpu.vector_store %arg7[%c0_26, %c0_27], %44 {strides = array<i32>} : memref<16x32xf32, #tpu.memory_space<vmem>>, vector<16x32xf32>,
    } else {
    }
    return
  }
  func.func @transform_0(%arg0: i32, %arg1: i32) -> (i32, i32) {
    %c0_i32 = arith.constant 0 : i32
    %c0_i32_0 = arith.constant 0 : i32
    return %arg0, %c0_i32 : i32, i32
  }
  func.func @transform_1(%arg0: i32, %arg1: i32) -> (i32, i32) {
    %c0_i32 = arith.constant 0 : i32
    return %arg0, %arg1 : i32, i32
  }
  func.func @transform_2(%arg0: i32, %arg1: i32) -> (i32, i32) {
    %c0_i32 = arith.constant 0 : i32
    return %arg0, %arg1 : i32, i32
  }
  func.func @transform_3(%arg0: i32, %arg1: i32) -> (i32, i32) {
    %c0_i32 = arith.constant 0 : i32
    %c0_i32_0 = arith.constant 0 : i32
    return %c0_i32, %arg1 : i32, i32
  }
  func.func @transform_4(%arg0: i32, %arg1: i32) -> (i32, i32) {
    %c0_i32 = arith.constant 0 : i32
    %c0_i32_0 = arith.constant 0 : i32
    return %arg1, %c0_i32 : i32, i32
  }
  func.func @transform_5(%arg0: i32, %arg1: i32) -> (i32, i32) {
    %c0_i32 = arith.constant 0 : i32
    %c0_i32_0 = arith.constant 0 : i32
    return %arg0, %c0_i32 : i32, i32
  }
}

</mosaic_0001>

<llo_original>
// kernel: tpu_custom_call.1
$region0: #{tpu_custom_call.1}
  #allocation0 [shape = 'u32[]', space=smem, size = 0x4, offset = 0x4, fixed_abs, tag = 'smem constant byte address 0x4 - core index']
  #allocation1 [shape = 'u32[144,128]{1,0:T(1,128)}', space=vmem, size = 0x12000, scoped, tag = 'internal scratch']
  #allocation2 [shape = 'f32[16,32]{1,0:T(8,128)}', space=vmem, size = 0x2000, scoped, tag = 'scratch operand']
  %s0 = inlined_call_operand.vmem [shape: f32[16,32], index: 0, kind: input, shape index: {}]
  %s1 = inlined_call_operand.vmem [shape: f32[16,128], index: 1, kind: input, shape index: {}]
  %s2 = inlined_call_operand.vmem [shape: f32[16,128], index: 2, kind: input, shape index: {}]
  %s3 = inlined_call_operand.vmem [shape: bf16[32,128], index: 3, kind: input, shape index: {}]
  %s4 = inlined_call_operand.vmem [shape: bf16[128,32], index: 4, kind: input, shape index: {}]
  %s5 = inlined_call_operand.hbm [shape: f32[16,32], index: 5, kind: output, shape index: {}]
  %s6 = sld [smem:[#allocation0]]
  $region38: #{tpu_custom_call.1} parent=0
    _
  %s8 = ssub.s32 1, %s6
  %s9 = scalar_select 0, %s8, %s6
  $region1: #{tpu_custom_call.1} parent=0
    #allocation3 [shape = 'u8[8192]{0}', space=vmem, size = 0x2000, scoped, tag = 'output window, operand 0, single buffered']
    #allocation4 [shape = 's32[1]{0}', space=sflag, size = 0x4, scoped, tag = 'scoped memory for tpu_custom_call.1']
    %10 = vsyncpa [#allocation4], 0
    // Predicated region
    $region2: #{tpu_custom_call.1} parent=1 // pred_check
      _
    $region3: #{tpu_custom_call.1} parent=1 // pred_check_branch
      %12 = sbr.rel (0) target = $region5
    $region4: #{tpu_custom_call.1} parent=1 // pred_region
      _
    $region5: #{tpu_custom_call.1} parent=1 // pred_fallthru
      _
    // Predicated region
    $region6: #{tpu_custom_call.1} parent=1 // pred_check
      _
    $region7: #{tpu_custom_call.1} parent=1 // pred_check_branch
      %14 = sbr.rel (0) target = $region9
    $region8: #{tpu_custom_call.1} parent=1 // pred_region
      _
    $region9: #{tpu_custom_call.1} parent=1 // pred_fallthru
      _
    // Predicated region
    $region10: #{tpu_custom_call.1} parent=1 // pred_check
      _
    $region11: #{tpu_custom_call.1} parent=1 // pred_check_branch
      %16 = sbr.rel (0) target = $region13
    $region12: #{tpu_custom_call.1} parent=1 // pred_region
      _
    $region13: #{tpu_custom_call.1} parent=1 // pred_fallthru
      _
    // Predicated region
    $region14: #{tpu_custom_call.1} parent=1 // pred_check
      _
    $region15: #{tpu_custom_call.1} parent=1 // pred_check_branch
      %18 = sbr.rel (0) target = $region17
    $region16: #{tpu_custom_call.1} parent=1 // pred_region
      _
    $region17: #{tpu_custom_call.1} parent=1 // pred_fallthru
      _
    // Predicated region
    $region18: #{tpu_custom_call.1} parent=1 // pred_check
      _
    $region19: #{tpu_custom_call.1} parent=1 // pred_check_branch
      %20 = sbr.rel (0) target = $region21
    $region20: #{tpu_custom_call.1} parent=1 // pred_region
      _
    $region21: #{tpu_custom_call.1} parent=1 // pred_fallthru
      _
    %v22 = vld [vmem:[%s0] sm:$0xff]
    %v23 = vld [vmem:[%s0 + $0x8] sm:$0xff]
    %vm24 = vcmask 261120
    %v25 = vsel %vm24, %v22, 0.0
    %26 = vadd.xlane.f32.xlu0 %v25
    %v27 = vpop.xlane.xlu0 %26
    %v28 = vsel %vm24, %v23, 0.0
    %29 = vadd.xlane.f32.xlu0 %v28
    %v30 = vpop.xlane.xlu0 %29
    %v31 = vrcp.pop 32.0
    %v32 = vmul.f32 %v27, %v31
    %v33 = vmul.f32 %v30, %v31
    %v34 = vsub.f32 %v22, %v32
    %v35 = vsub.f32 %v23, %v33
    %v36 = vmul.f32 %v34, %v34
    %v37 = vmul.f32 %v35, %v35
    %v38 = vsel %vm24, %v36, 0.0
    %39 = vadd.xlane.f32.xlu0 %v38
    %v40 = vpop.xlane.xlu0 %39
    %v41 = vsel %vm24, %v37, 0.0
    %42 = vadd.xlane.f32.xlu0 %v41
    %v43 = vpop.xlane.xlu0 %42
    %v44 = vmul.f32 %v40, %v31
    %v45 = vmul.f32 %v43, %v31
    %v46 = vmax.f32 %v44, 1e-05
    %v47 = vmax.f32 %v45, 1e-05
    %v48 = vrsqrt.pop %v46
    %v49 = vrsqrt.pop %v47
    %v50 = vmul.f32 %v34, %v48
    %v51 = vmul.f32 %v35, %v49
    %v52 = vpack.c.bf16 %v51, %v50
    %v53 = vld [vmem:[%s3] sm:$0xf]
    %v54 = vld [vmem:[%s3 + $0x4] sm:$0xf]
    %v55 = vld [vmem:[%s3 + $0x8] sm:$0xf]
    %v56 = vld [vmem:[%s3 + $0xc] sm:$0xf]
    %v61 = vunpack.c.l.b16 %v53
    %v62 = vunpack.c.l.b16 %v54
    %v63 = vunpack.c.l.b16 %v55
    %v64 = vunpack.c.l.b16 %v56
    %v65 = vpack.c.b16 %v62, %v61
    %v66 = vpack.c.b16 %v64, %v63
    %v70 = vsel %vm24, %v52, 0
    %72 = vmatprep.subr.bf16.mxu0 0
    %73 = vmatpush1.bf16.msra.mxu0 %v65
    %74 = vmatprep.subr.bf16.mxu0 0
    %75 = vmatpush1.bf16.msra.mxu0 %v66
    %76 = vmatprep.subr.bf16.mxu0 0
    %77 = vmatpush1.bf16.msra.mxu0 0
    %78 = vmatprep.subr.bf16.mxu0 0
    %79 = vmatpush1.bf16.msra.mxu0 0
    %80 = vmatprep.subr.bf16.mxu0 0
    %81 = vmatpush1.bf16.msra.mxu0 0
    %82 = vmatprep.subr.bf16.mxu0 0
    %83 = vmatpush1.bf16.msra.mxu0 0
    %84 = vmatprep.subr.bf16.mxu0 0
    %85 = vmatpush1.bf16.msra.mxu0 0
    %86 = vmatprep.subr.bf16.mxu0 0
    %87 = vmatpush1.bf16.msra.mxu0 0
    %88 = vmatprep.subr.bf16.mxu0 0
    %89 = vmatpush1.bf16.msra.mxu0 0
    %90 = vmatprep.subr.bf16.mxu0 0
    %91 = vmatpush1.bf16.msra.mxu0 0
    %92 = vmatprep.subr.bf16.mxu0 0
    %93 = vmatpush1.bf16.msra.mxu0 0
    %94 = vmatprep.subr.bf16.mxu0 0
    %95 = vmatpush1.bf16.msra.mxu0 0
    %96 = vmatprep.subr.bf16.mxu0 0
    %97 = vmatpush1.bf16.msra.mxu0 0
    %98 = vmatprep.subr.bf16.mxu0 0
    %99 = vmatpush1.bf16.msra.mxu0 0
    %100 = vmatprep.subr.bf16.mxu0 0
    %101 = vmatpush1.bf16.msra.mxu0 0
    %102 = vmatprep.subr.bf16.mxu0 0
    %103 = vmatpush1.bf16.msra.mxu0 0
    %104 = vmatprep.mubr.bf16.mxu0 0
    %105 = vmatmul.mubr.bf16.gmra.mrb[0].mxu0 %v70
    %v106 = vpop.f32.mrb[0].mxu0
    %v107 = vadd.f32 0.0, %v106
    %v108 = vpop.f32.mrb[0].mxu0
    %v109 = vpop.f32.mrb[0].mxu0
    %v110 = vadd.f32 0.0, %v109
    %v111 = vpop.f32.mrb[0].mxu0
    %112 = vdwg.mxu0
    %v113 = vxor.u32 %v107, 2147483648
    %v114 = vxor.u32 %v110, 2147483648
    %v115 = vmul.f32 %v113, 1.442695
    %v116 = vpow.pop %v115
    %v117 = vmul.f32 %v114, 1.442695
    %v118 = vpow.pop %v117
    %v119 = vadd.f32 %v116, 1.0
    %v120 = vadd.f32 %v118, 1.0
    %v121 = vrcp.pop %v119
    %v122 = vmul.f32 1.0, %v121
    %v123 = vrcp.pop %v120
    %v124 = vmul.f32 1.0, %v123
    %v125 = vmul.f32 %v107, %v122
    %v126 = vmul.f32 %v110, %v124
    %v127 = vld [vmem:[%s1] sm:$0xff]
    %v128 = vld [vmem:[%s1 + $0x8] sm:$0xff]
    %v129 = vadd.f32 %v127, 1.0
    %v130 = vadd.f32 %v128, 1.0
    %v131 = vmul.f32 %v125, %v129
    %v132 = vmul.f32 %v126, %v130
    %v133 = vld [vmem:[%s2] sm:$0xff]
    %v134 = vld [vmem:[%s2 + $0x8] sm:$0xff]
    %v135 = vadd.f32 %v131, %v133
    %v136 = vadd.f32 %v132, %v134
    %p137 = scmp.eq.s32.totalorder 0, 0
    // Predicated region
    $region22: #{tpu_custom_call.1} parent=1 // pred_check
      %p138 = pneg %p137
    $region23: #{tpu_custom_call.1} parent=1 // pred_check_branch
      %140 = sbr.rel (%p138) target = $region25
    $region24: #{tpu_custom_call.1} parent=1 // pred_region
      %141 = vst.msk [vmem:[#allocation2] sm:$0xff] %vm24, 0.0
      %142 = vst.msk [vmem:[#allocation2 + $0x8] sm:$0xff] %vm24, 0.0
    $region25: #{tpu_custom_call.1} parent=1 // pred_fallthru
      _
    %v143 = vld [vmem:[#allocation2] sm:$0xff]
    %v144 = vld [vmem:[#allocation2 + $0x8] sm:$0xff]
    %v145 = vpack.c.bf16 %v136, %v135
    %v146 = vld [vmem:[%s4] sm:$0xf]
    %v147 = vld [vmem:[%s4 + $0x4] sm:$0xf]
    %v148 = vld [vmem:[%s4 + $0x8] sm:$0xf]
    %v149 = vld [vmem:[%s4 + $0xc] sm:$0xf]
    %v150 = vld [vmem:[%s4 + $0x10] sm:$0xf]
    %v151 = vld [vmem:[%s4 + $0x14] sm:$0xf]
    %v152 = vld [vmem:[%s4 + $0x18] sm:$0xf]
    %v153 = vld [vmem:[%s4 + $0x1c] sm:$0xf]
    %v154 = vld [vmem:[%s4 + $0x20] sm:$0xf]
    %v155 = vld [vmem:[%s4 + $0x24] sm:$0xf]
    %v156 = vld [vmem:[%s4 + $0x28] sm:$0xf]
    %v157 = vld [vmem:[%s4 + $0x2c] sm:$0xf]
    %v158 = vld [vmem:[%s4 + $0x30] sm:$0xf]
    %v159 = vld [vmem:[%s4 + $0x34] sm:$0xf]
    %v160 = vld [vmem:[%s4 + $0x38] sm:$0xf]
    %v161 = vld [vmem:[%s4 + $0x3c] sm:$0xf]
    %v178 = vunpack.c.l.b16 %v146
    %v179 = vunpack.c.l.b16 %v147
    %v180 = vunpack.c.l.b16 %v148
    %v181 = vunpack.c.l.b16 %v149
    %v182 = vunpack.c.l.b16 %v150
    %v183 = vunpack.c.l.b16 %v151
    %v184 = vunpack.c.l.b16 %v152
    %v185 = vunpack.c.l.b16 %v153
    %v186 = vunpack.c.l.b16 %v154
    %v187 = vunpack.c.l.b16 %v155
    %v188 = vunpack.c.l.b16 %v156
    %v189 = vunpack.c.l.b16 %v157
    %v190 = vunpack.c.l.b16 %v158
    %v191 = vunpack.c.l.b16 %v159
    %v192 = vunpack.c.l.b16 %v160
    %v193 = vunpack.c.l.b16 %v161
    %v194 = vpack.c.b16 %v179, %v178
    %v195 = vpack.c.b16 %v181, %v180
    %v196 = vpack.c.b16 %v183, %v182
    %v197 = vpack.c.b16 %v185, %v184
    %v198 = vpack.c.b16 %v187, %v186
    %v199 = vpack.c.b16 %v189, %v188
    %v200 = vpack.c.b16 %v191, %v190
    %v201 = vpack.c.b16 %v193, %v192
    %210 = vmatprep.subr.bf16.mxu0 0
    %211 = vmatpush1.bf16.msra.mxu0 %v194
    %212 = vmatprep.subr.bf16.mxu0 0
    %213 = vmatpush1.bf16.msra.mxu0 %v195
    %214 = vmatprep.subr.bf16.mxu0 0
    %215 = vmatpush1.bf16.msra.mxu0 %v196
    %216 = vmatprep.subr.bf16.mxu0 0
    %217 = vmatpush1.bf16.msra.mxu0 %v197
    %218 = vmatprep.subr.bf16.mxu0 0
    %219 = vmatpush1.bf16.msra.mxu0 %v198
    %220 = vmatprep.subr.bf16.mxu0 0
    %221 = vmatpush1.bf16.msra.mxu0 %v199
    %222 = vmatprep.subr.bf16.mxu0 0
    %223 = vmatpush1.bf16.msra.mxu0 %v200
    %224 = vmatprep.subr.bf16.mxu0 0
    %225 = vmatpush1.bf16.msra.mxu0 %v201
    %226 = vmatprep.subr.bf16.mxu0 0
    %227 = vmatpush1.bf16.msra.mxu0 0
    %228 = vmatprep.subr.bf16.mxu0 0
    %229 = vmatpush1.bf16.msra.mxu0 0
    %230 = vmatprep.subr.bf16.mxu0 0
    %231 = vmatpush1.bf16.msra.mxu0 0
    %232 = vmatprep.subr.bf16.mxu0 0
    %233 = vmatpush1.bf16.msra.mxu0 0
    %234 = vmatprep.subr.bf16.mxu0 0
    %235 = vmatpush1.bf16.msra.mxu0 0
    %236 = vmatprep.subr.bf16.mxu0 0
    %237 = vmatpush1.bf16.msra.mxu0 0
    %238 = vmatprep.subr.bf16.mxu0 0
    %239 = vmatpush1.bf16.msra.mxu0 0
    %240 = vmatprep.subr.bf16.mxu0 0
    %241 = vmatpush1.bf16.msra.mxu0 0
    %242 = vmatprep.mubr.bf16.mxu0 0
    %243 = vmatmul.mubr.bf16.gmra.mrb[0].mxu0 %v145
    %v244 = vpop.f32.mrb[0].mxu0
    %v245 = vadd.f32 0.0, %v244
    %v246 = vpop.f32.mrb[0].mxu0
    %v247 = vpop.f32.mrb[0].mxu0
    %v248 = vadd.f32 0.0, %v247
    %v249 = vpop.f32.mrb[0].mxu0
    %250 = vdwg.mxu0
    %v251 = vadd.f32 %v143, %v245
    %v252 = vadd.f32 %v144, %v248
    %253 = vst.msk [vmem:[#allocation2] sm:$0xff] %vm24, %v251
    %254 = vst.msk [vmem:[#allocation2 + $0x8] sm:$0xff] %vm24, %v252
    // Predicated region
    $region26: #{tpu_custom_call.1} parent=1 // pred_check
      %p255 = pneg %p137
    $region27: #{tpu_custom_call.1} parent=1 // pred_check_branch
      %257 = sbr.rel (%p255) target = $region29
    $region28: #{tpu_custom_call.1} parent=1 // pred_region
      %v258 = vld [vmem:[#allocation2] sm:$0xff]
      %v259 = vld [vmem:[#allocation2 + $0x8] sm:$0xff]
      %260 = vst.msk [vmem:[#allocation3] sm:$0xff] %vm24, %v258
      %261 = vst.msk [vmem:[#allocation3 + $0x8] sm:$0xff] %vm24, %v259
    $region29: #{tpu_custom_call.1} parent=1 // pred_fallthru
      _
    // Predicated region
    $region30: #{tpu_custom_call.1} parent=1 // pred_check
      _
    $region31: #{tpu_custom_call.1} parent=1 // pred_check_branch
      %263 = sbr.rel (0) target = $region33
    $region32: #{tpu_custom_call.1} parent=1 // pred_region
      %s265 = ssub.s32 256, 256
      %266 = vsyncadd [#allocation4], %s265
      %s267 = sshll.u32 [#allocation3], 4
      %s268 = int_to_ptr.vmem [resolvable:$true] %s267
      %273 = dma.vmem_to_hbm [thread:$0]  %s268, 256, %s5, [#allocation4], 128, 128, 8
    $region33: #{tpu_custom_call.1} parent=1 // pred_fallthru
      _
    // Predicated region
    $region34: #{tpu_custom_call.1} parent=1 // pred_check
      _
    $region35: #{tpu_custom_call.1} parent=1 // pred_check_branch
      %275 = sbr.rel (0) target = $region37
    $region36: #{tpu_custom_call.1} parent=1 // pred_region
      %276 = dma.done [#allocation4], 256
    $region37: #{tpu_custom_call.1} parent=1 // pred_fallthru
      _
    %277 = vsyncpa [#allocation4], 1

</llo_original>
